<compile_context>
chip_gen: v5e
topology: v5e:2x2
jax: 0.10.0
libtpu: 0.0.40
codegen_flags: <defaults>
</compile_context>

<pallas_src>
import jax
import jax.numpy as jnp
from jax.experimental import pallas as pl
from jax.experimental.pallas import tpu as pltpu

# ----- model dims (from the module) -----
INPUT_DIM = 3 * 3 * 4       # x(s) flattens a (3,3,4) template -> 36
FC1_OUT = 12                # fc1: input_dim -> 12
OUTPUT_DIM = 8              # fc1_1: 12 -> output_dim (small hidden for heads)
NUM_ACTIONS = 4             # fc2: output_dim -> 4 (softmax)
VALUE_DIM = 1               # fc3: output_dim -> 1
HEAD_DIM = NUM_ACTIONS + VALUE_DIM   # fused actor+critic head = 5

# ----- padded (tile-aligned) dims -----
F_PAD = 128                 # lane width; all feature dims fit in one lane tile
ONE_LANE = F_PAD - 1        # constant-1 lane carrying folded biases (x uses lanes 0..35)
MAX_TILE_B = 256            # batch tile cap = MXU-native rows on v6e/v7x
NEG_INF = -1e30             # Python float literal (NOT a captured jnp constant)


def actor_critic_kernel(base_ref, w_ref, o_ref):
    """Fused forward for one batch tile.

    base_ref : (TILE_B, 1) int32  flat one-hot offsets, (row*3+col)*4  (-8 for pad rows)
    w_ref    : (2, 128, 128) f32  [0] folded fc1_1∘fc1 (+bias row, +1-passthrough),
                                  [1] fused fc2/fc3 head (+bias row)
    o_ref    : (TILE_B, 128) f32  lanes 0..3 = action probs, lane 4 = value
    """
    tb = o_ref.shape[0]
    base = base_ref[...]                                             # (tb, 1) int32
    lane = jax.lax.broadcasted_iota(jnp.int32, (tb, F_PAD), 1)       # (tb, 128)

    # Build x(s) in-kernel: 4 ones starting at the flat offset, plus the
    # constant-1 bias lane (lane 127).
    x = (((lane >= base) & (lane < base + 4)) | (lane == ONE_LANE)).astype(jnp.float32)

    # relu(fc1_1(fc1(x))) with folded weights + bias -> single MXU matmul.
    h = jnp.maximum(jnp.dot(x, w_ref[0], preferred_element_type=jnp.float32), 0.0)
    # fused actor/critic head (lanes 0..3 logits, lane 4 value), bias folded.
    head = jnp.dot(h, w_ref[1], preferred_element_type=jnp.float32)

    act_mask = lane < NUM_ACTIONS
    logits = jnp.where(act_mask, head, NEG_INF)                      # mask padded lanes
    m = jnp.max(logits, axis=-1, keepdims=True)
    e = jnp.exp(logits - m)
    denom = jnp.sum(e, axis=-1, keepdims=True)
    probs = e * pl.reciprocal(denom, approx=False)                   # EUP, off the VALU

    # lanes 0..3: probs; lane 4: raw value; lanes 5..127 are padding (never read).
    o_ref[...] = jnp.where(act_mask, probs, head)


def prepare_params(params):
    """One-time fold + bias-fold + pad + transpose of the PyTorch-layout params."""
    w1, b1, w11, b11, w2, b2, w3, b3 = params
    # Fold fc1 / fc1_1 (no activation between them): exact algebra.
    w12 = (w11 @ w1).astype(jnp.float32)            # (OUTPUT_DIM, INPUT_DIM)
    b12 = (w11 @ b1 + b11).astype(jnp.float32)      # (OUTPUT_DIM,)
    # Fuse fc2 (actions) and fc3 (value) into one head.
    w_head = jnp.concatenate([w2, w3], axis=0).astype(jnp.float32)   # (HEAD_DIM, OUTPUT_DIM)
    b_head = jnp.concatenate([b2, b3], axis=0).astype(jnp.float32)   # (HEAD_DIM,)

    w_stack = jnp.zeros((2, F_PAD, F_PAD), jnp.float32)
    # layer 0: x(128) -> h(128); bias in row ONE_LANE, plus 1.0 passthrough so the
    # constant-1 lane survives the ReLU and feeds the head bias.
    w_stack = w_stack.at[0, :INPUT_DIM, :OUTPUT_DIM].set(w12.T)
    w_stack = w_stack.at[0, ONE_LANE, :OUTPUT_DIM].set(b12)
    w_stack = w_stack.at[0, ONE_LANE, ONE_LANE].set(1.0)
    # layer 1: h(128) -> head(128); lanes 0..3 actions, lane 4 value; bias in row ONE_LANE.
    w_stack = w_stack.at[1, :OUTPUT_DIM, :HEAD_DIM].set(w_head.T)
    w_stack = w_stack.at[1, ONE_LANE, :HEAD_DIM].set(b_head)
    return w_stack


def _round_up(n, m):
    return ((n + m - 1) // m) * m


def build_base_offsets(states):
    """states: (B, 2) int32 (row, col). Returns (B_pad, 1) int32 flat one-hot offsets."""
    B = states.shape[0]
    tile_b = min(_round_up(B, 8), MAX_TILE_B)
    b_pad = _round_up(B, tile_b)
    base = (states[:, 0] * 3 + states[:, 1]) * 4
    out = jnp.full((b_pad, 1), -8, dtype=jnp.int32)     # padded rows -> all-zero one-hot
    return out.at[:B, 0].set(base.astype(jnp.int32))


def actor_critic_forward(base, w_stack):
    """base: (B_pad, 1) int32. Returns (B_pad, 128) f32; lanes 0..3 = probs, lane 4 = value."""
    b_pad = base.shape[0]
    tile_b = min(b_pad, MAX_TILE_B)        # small batches: one grid step; large: 256-row tiles
    grid_b = b_pad // tile_b
    return pl.pallas_call(
        actor_critic_kernel,
        out_shape=jax.ShapeDtypeStruct((b_pad, F_PAD), jnp.float32),
        grid=(grid_b,),
        in_specs=[
            pl.BlockSpec((tile_b, 1), lambda i: (i, 0)),           # one-hot offsets (4 B/row)
            pl.BlockSpec((2, F_PAD, F_PAD), lambda i: (0, 0, 0)),  # weights (resident)
        ],
        out_specs=pl.BlockSpec((tile_b, F_PAD), lambda i: (i, 0)),
        compiler_params=pltpu.CompilerParams(
            dimension_semantics=("parallel",) if grid_b > 1 else ("arbitrary",)),
    )(base, w_stack)


def starting_state():
    return (0, 0)


def x_of_state(s):
    """Mirror of the PyTorch helper x(s)."""
    row, col = s
    template = jnp.zeros((3, 3, 4), dtype=jnp.float32).at[row, col].set(1.0)
    return template.reshape(-1)                                    # (36,)


def init_params(key):
    """PyTorch-default-style init: U(-1/sqrt(fan_in), 1/sqrt(fan_in))."""
    def linear(k, fan_in, fan_out):
        kw, kb = jax.random.split(k)
        bound = 1.0 / (fan_in ** 0.5)
        w = jax.random.uniform(kw, (fan_out, fan_in), jnp.float32, -bound, bound)
        b = jax.random.uniform(kb, (fan_out,), jnp.float32, -bound, bound)
        return w, b

    k1, k2, k3, k4 = jax.random.split(key, 4)
    w1, b1 = linear(k1, INPUT_DIM, FC1_OUT)        # fc1
    w11, b11 = linear(k2, FC1_OUT, OUTPUT_DIM)     # fc1_1
    w2, b2 = linear(k3, OUTPUT_DIM, NUM_ACTIONS)   # fc2
    w3, b3 = linear(k4, OUTPUT_DIM, VALUE_DIM)     # fc3
    return (w1, b1, w11, b11, w2, b2, w3, b3)


def reference_forward(xs, params):
    """Unfolded original-semantics reference (fc1 -> fc1_1+relu -> fc2/softmax, fc3)."""
    w1, b1, w11, b11, w2, b2, w3, b3 = params
    h = xs @ w1.T + b1
    h = jnp.maximum(h @ w11.T + b11, 0.0)
    probs = jax.nn.softmax(h @ w2.T + b2, axis=-1)
    value = h @ w3.T + b3
    return probs, value


if __name__ == "__main__":
    key = jax.random.PRNGKey(0)
    params = init_params(key)
    w_stack = prepare_params(params)                   # hoisted: fold/pad ONCE

    # PPO-style batch evaluation over all 9 grid states (includes starting_state()).
    states = [(r, c) for r in range(3) for c in range(3)]
    states_arr = jnp.asarray(states, dtype=jnp.int32)  # (9, 2)
    base = build_base_offsets(states_arr)              # (16, 1) int32, single grid step

    fwd = jax.jit(actor_critic_forward)
    out = jax.block_until_ready(fwd(base, w_stack))

    B = len(states)
    probs = out[:B, :NUM_ACTIONS]                      # (9, 4)
    value = out[:B, NUM_ACTIONS:NUM_ACTIONS + VALUE_DIM]   # (9, 1)

    xs_ref = jnp.stack([x_of_state(s) for s in states])
    probs_ref, value_ref = reference_forward(xs_ref, params)

    assert probs.shape == (B, NUM_ACTIONS), probs.shape
    assert value.shape == (B, VALUE_DIM), value.shape
    assert jnp.allclose(probs, probs_ref, atol=1e-5, rtol=1e-5), (probs, probs_ref)
    assert jnp.allclose(value, value_ref, atol=1e-5, rtol=1e-5), (value, value_ref)

    # Single-state path (mirrors forward(starting_state()) -> (probs, value)).
    base0 = build_base_offsets(jnp.asarray([starting_state()], dtype=jnp.int32))
    out0 = jax.block_until_ready(fwd(base0, w_stack))
    p0, v0 = out0[0, :NUM_ACTIONS], out0[0, NUM_ACTIONS:NUM_ACTIONS + VALUE_DIM]
    assert jnp.allclose(p0, probs_ref[0], atol=1e-5, rtol=1e-5)
    assert jnp.allclose(v0, value_ref[0], atol=1e-5, rtol=1e-5)

    print("KERNEL_OK")
</pallas_src>

<mosaic_0001>
module attributes {stable_mosaic.version = 11 : i64} {
  func.func @actor_critic_kernel(%arg0: i32, %arg1: memref<16x1xi32, #tpu.memory_space<vmem>>, %arg2: memref<2x128x128xf32, #tpu.memory_space<vmem>>, %arg3: memref<16x128xf32, #tpu.memory_space<vmem>>) attributes {dimension_semantics = [#tpu.dimension_semantics<arbitrary>], iteration_bounds = array<i64: 1>, scalar_prefetch = 0 : i64, scratch_operands = 0 : i64, tpu.core_type = #tpu.core_type<tc>, window_params = [{transform_indices = @transform_0, window_bounds = array<i64: 16, 1>}, {pipeline_mode = #tpu.pipeline_mode<synchronous>, transform_indices = @transform_1, window_bounds = array<i64: 2, 128, 128>}, {transform_indices = @transform_2, window_bounds = array<i64: 16, 128>}]} {
    %c0 = arith.constant 0 : index
    %c0_0 = arith.constant 0 : index
    %0 = vector.load %arg1[%c0, %c0_0] : memref<16x1xi32, #tpu.memory_space<vmem>>, vector<16x1xi32>
    %1 = tpu.iota {dimensions = array<i32: 1>} : vector<16x128xi32>
    %2 = vector.broadcast %0 : vector<16x1xi32> to vector<16x128xi32>
    %3 = arith.cmpi sge, %1, %2 : vector<16x128xi32>
    %c4_i32 = arith.constant 4 : i32
    %4 = vector.broadcast %c4_i32 : i32 to vector<16x1xi32>
    %5 = arith.addi %0, %4 : vector<16x1xi32>
    %6 = vector.broadcast %5 : vector<16x1xi32> to vector<16x128xi32>
    %7 = arith.cmpi slt, %1, %6 : vector<16x128xi32>
    %8 = arith.andi %3, %7 : vector<16x128xi1>
    %c127_i32 = arith.constant 127 : i32
    %9 = vector.broadcast %c127_i32 : i32 to vector<16x128xi32>
    %10 = arith.cmpi eq, %1, %9 : vector<16x128xi32>
    %11 = arith.ori %8, %10 : vector<16x128xi1>
    %12 = arith.extui %11 : vector<16x128xi1> to vector<16x128xi32>
    %13 = arith.sitofp %12 : vector<16x128xi32> to vector<16x128xf32>
    %c0_1 = arith.constant 0 : index
    %c0_2 = arith.constant 0 : index
    %c0_3 = arith.constant 0 : index
    %14 = vector.load %arg2[%c0_1, %c0_2, %c0_3] : memref<2x128x128xf32, #tpu.memory_space<vmem>>, vector<1x128x128xf32>
    %15 = vector.shape_cast %14 : vector<1x128x128xf32> to vector<128x128xf32>
    %cst = arith.constant dense<0.000000e+00> : vector<16x128xf32>
    %16 = tpu.matmul %13, %15, %cst {dimension_numbers = #tpu.dot_dimension_numbers<[1], [0], [0], [1], [0, 0, 1, 1], [], []>} : vector<16x128xf32>, vector<128x128xf32>, vector<16x128xf32> -> vector<16x128xf32>
    %cst_4 = arith.constant 0.000000e+00 : f32
    %17 = vector.broadcast %cst_4 : f32 to vector<16x128xf32>
    %18 = arith.maximumf %16, %17 : vector<16x128xf32>
    %c1 = arith.constant 1 : index
    %c0_5 = arith.constant 0 : index
    %c0_6 = arith.constant 0 : index
    %19 = vector.load %arg2[%c1, %c0_5, %c0_6] : memref<2x128x128xf32, #tpu.memory_space<vmem>>, vector<1x128x128xf32>
    %20 = vector.shape_cast %19 : vector<1x128x128xf32> to vector<128x128xf32>
    %cst_7 = arith.constant dense<0.000000e+00> : vector<16x128xf32>
    %21 = tpu.matmul %18, %20, %cst_7 {dimension_numbers = #tpu.dot_dimension_numbers<[1], [0], [0], [1], [0, 0, 1, 1], [], []>} : vector<16x128xf32>, vector<128x128xf32>, vector<16x128xf32> -> vector<16x128xf32>
    %c4_i32_8 = arith.constant 4 : i32
    %22 = vector.broadcast %c4_i32_8 : i32 to vector<16x128xi32>
    %23 = arith.cmpi slt, %1, %22 : vector<16x128xi32>
    %cst_9 = arith.constant -1.000000e+30 : f32
    %24 = vector.broadcast %cst_9 : f32 to vector<16x128xf32>
    %25 = arith.select %23, %21, %24 : vector<16x128xi1>, vector<16x128xf32>
    %cst_10 = arith.constant dense<0xFF800000> : vector<16xf32>
    %26 = vector.multi_reduction <maximumf>, %25, %cst_10 [1] : vector<16x128xf32> to vector<16xf32>
    %27 = vector.shape_cast %26 : vector<16xf32> to vector<16x1xf32>
    %28 = vector.broadcast %27 : vector<16x1xf32> to vector<16x128xf32>
    %29 = arith.subf %25, %28 : vector<16x128xf32>
    %30 = math.exp %29 : vector<16x128xf32>
    %cst_11 = arith.constant dense<0.000000e+00> : vector<16xf32>
    %31 = vector.multi_reduction <add>, %30, %cst_11 [1] : vector<16x128xf32> to vector<16xf32>
    %32 = vector.shape_cast %31 : vector<16xf32> to vector<16x1xf32>
    %33 = tpu.reciprocal %32 : vector<16x1xf32> -> vector<16x1xf32>
    %34 = vector.broadcast %33 : vector<16x1xf32> to vector<16x128xf32>
    %35 = arith.mulf %30, %34 : vector<16x128xf32>
    %36 = arith.select %23, %35, %21 : vector<16x128xi1>, vector<16x128xf32>
    %c0_12 = arith.constant 0 : index
    %c0_13 = arith.constant 0 : index
    %37 = vector.load %arg3[%c0_12, %c0_13] : memref<16x128xf32, #tpu.memory_space<vmem>>, vector<16x128xf32>
    tpu.vector_store %arg3[%c0_12, %c0_13], %36 {strides = array<i32>} : memref<16x128xf32, #tpu.memory_space<vmem>>, vector<16x128xf32>,
    return
  }
  func.func @transform_0(%arg0: i32) -> (i32, i32) {
    %c0_i32 = arith.constant 0 : i32
    %c0_i32_0 = arith.constant 0 : i32
    return %arg0, %c0_i32 : i32, i32
  }
  func.func @transform_1(%arg0: i32) -> (i32, i32, i32) {
    %c0_i32 = arith.constant 0 : i32
    %c0_i32_0 = arith.constant 0 : i32
    %c0_i32_1 = arith.constant 0 : i32
    %c0_i32_2 = arith.constant 0 : i32
    return %c0_i32, %c0_i32_0, %c0_i32_1 : i32, i32, i32
  }
  func.func @transform_2(%arg0: i32) -> (i32, i32) {
    %c0_i32 = arith.constant 0 : i32
    %c0_i32_0 = arith.constant 0 : i32
    return %arg0, %c0_i32 : i32, i32
  }
}

</mosaic_0001>

<llo_original>
// kernel: actor_critic_forward.1
$region0: #{actor_critic_forward.1}
  #allocation0 [shape = 'u32[]', space=smem, size = 0x4, offset = 0x4, fixed_abs, tag = 'smem constant byte address 0x4 - core index']
  #allocation1 [shape = 'u32[72,128]{1,0:T(1,128)}', space=vmem, size = 0x9000, scoped, tag = 'internal scratch']
  %s0 = inlined_call_operand.vmem [shape: s32[16,1], index: 0, kind: input, shape index: {}]
  %s1 = inlined_call_operand.hbm [shape: f32[2,128,128], index: 1, kind: input, shape index: {}]
  %s2 = inlined_call_operand.hbm [shape: f32[16,128], index: 2, kind: output, shape index: {}]
  %s3 = sld [smem:[#allocation0]]
  $region22: #{actor_critic_forward.1} parent=0
    _
  %s5 = ssub.s32 1, %s3
  %s6 = scalar_select 0, %s5, %s3
  $region1: #{actor_critic_forward.1} parent=0
    #allocation2 [shape = 'u8[131072]{0}', space=vmem, size = 0x20000, scoped, tag = 'input window, operand 1, single buffered']
    #allocation3 [shape = 's32[1]{0}', space=sflag, size = 0x4, scoped, tag = 'scoped memory for actor_critic_forward.1']
    #allocation4 [shape = 's32[1]{0}', space=sflag, size = 0x4, scoped, tag = 'scoped memory for actor_critic_forward.1']
    #allocation5 [shape = 'u8[8192]{0}', space=vmem, size = 0x2000, scoped, tag = 'output window, operand 0, single buffered']
    %7 = vsyncpa [#allocation3], 0
    %8 = vsyncpa [#allocation4], 0
    // Predicated region
    $region2: #{actor_critic_forward.1} parent=1 // pred_check
      _
    $region3: #{actor_critic_forward.1} parent=1 // pred_check_branch
      %10 = sbr.rel (0) target = $region5
    $region4: #{actor_critic_forward.1} parent=1 // pred_region
      _
    $region5: #{actor_critic_forward.1} parent=1 // pred_fallthru
      _
    // Predicated region
    $region6: #{actor_critic_forward.1} parent=1 // pred_check
      _
    $region7: #{actor_critic_forward.1} parent=1 // pred_check_branch
      %12 = sbr.rel (0) target = $region9
    $region8: #{actor_critic_forward.1} parent=1 // pred_region
      %14 = vsyncadd [#allocation3], 0
      %s15 = sshll.u32 %s1, 4
      %s16 = int_to_ptr.hbm [resolvable:$true] %s15
      %s17 = sshll.u32 [#allocation2], 4
      %s18 = int_to_ptr.vmem [resolvable:$true] %s17
      %23 = dma.hbm_to_vmem [thread:$0]  %s16, 4096, %s18, [#allocation3], 128, 128, 8
    $region9: #{actor_critic_forward.1} parent=1 // pred_fallthru
      _
    // Predicated region
    $region10: #{actor_critic_forward.1} parent=1 // pred_check
      _
    $region11: #{actor_critic_forward.1} parent=1 // pred_check_branch
      %25 = sbr.rel (0) target = $region13
    $region12: #{actor_critic_forward.1} parent=1 // pred_region
      %27 = dma.done [#allocation3], 4096
    $region13: #{actor_critic_forward.1} parent=1 // pred_fallthru
      _
    %v28 = vld [vmem:[%s0] sm:$0xff]
    %v29 = vld [vmem:[%s0 + $0x8] sm:$0xff]
    %v30 = vlaneseq
    %v31 = vand.u32 %v30, 127
    %32 = vset.pattern.permute.xlu0 0
    %33 = vperm.xlu0 %32, %v28
    %v34 = vpop.permute.xlu0 %33
    %35 = vset.pattern.permute.xlu0 0
    %36 = vperm.xlu0 %35, %v29
    %v37 = vpop.permute.xlu0 %36
    %vm38 = vcmp.ge.s32.totalorder %v31, %v34
    %vm39 = vcmp.ge.s32.totalorder %v31, %v37
    %v40 = vadd.s32 %v28, 4
    %v41 = vadd.s32 %v29, 4
    %42 = vset.pattern.permute.xlu0 0
    %43 = vperm.xlu0 %42, %v40
    %v44 = vpop.permute.xlu0 %43
    %45 = vset.pattern.permute.xlu0 0
    %46 = vperm.xlu0 %45, %v41
    %v47 = vpop.permute.xlu0 %46
    %vm48 = vcmp.lt.s32.totalorder %v31, %v44
    %vm49 = vcmp.lt.s32.totalorder %v31, %v47
    %vm50 = vmand %vm38, %vm48
    %vm51 = vmand %vm39, %vm49
    %vm52 = vcmp.eq.s32.totalorder %v31, 127
    %vm53 = vmor %vm50, %vm52
    %vm54 = vmor %vm51, %vm52
    %v55 = vsel %vm53, 1, 0
    %v56 = vsel %vm54, 1, 0
    %v57 = vcvt.s32.f32 %v55
    %v58 = vcvt.s32.f32 %v56
    %v59 = vld [vmem:[#allocation2] sm:$0xff]
    %v60 = vld [vmem:[#allocation2 + $0x8] sm:$0xff]
    %v61 = vld [vmem:[#allocation2 + $0x10] sm:$0xff]
    %v62 = vld [vmem:[#allocation2 + $0x18] sm:$0xff]
    %v63 = vld [vmem:[#allocation2 + $0x20] sm:$0xff]
    %v64 = vld [vmem:[#allocation2 + $0x28] sm:$0xff]
    %v65 = vld [vmem:[#allocation2 + $0x30] sm:$0xff]
    %v66 = vld [vmem:[#allocation2 + $0x38] sm:$0xff]
    %v67 = vld [vmem:[#allocation2 + $0x40] sm:$0xff]
    %v68 = vld [vmem:[#allocation2 + $0x48] sm:$0xff]
    %v69 = vld [vmem:[#allocation2 + $0x50] sm:$0xff]
    %v70 = vld [vmem:[#allocation2 + $0x58] sm:$0xff]
    %v71 = vld [vmem:[#allocation2 + $0x60] sm:$0xff]
    %v72 = vld [vmem:[#allocation2 + $0x68] sm:$0xff]
    %v73 = vld [vmem:[#allocation2 + $0x70] sm:$0xff]
    %v74 = vld [vmem:[#allocation2 + $0x78] sm:$0xff]
    %75 = vmatpush.msra.mxu0 %v74
    %76 = vmatpush.msra.mxu0 %v73
    %77 = vmatpush.msra.mxu0 %v72
    %78 = vmatpush.msra.mxu0 %v71
    %79 = vmatpush.msra.mxu0 %v70
    %80 = vmatpush.msra.mxu0 %v69
    %81 = vmatpush.msra.mxu0 %v68
    %82 = vmatpush.msra.mxu0 %v67
    %83 = vmatpush.msra.mxu0 %v66
    %84 = vmatpush.msra.mxu0 %v65
    %85 = vmatpush.msra.mxu0 %v64
    %86 = vmatpush.msra.mxu0 %v63
    %87 = vmatpush.msra.mxu0 %v62
    %88 = vmatpush.msra.mxu0 %v61
    %89 = vmatpush.msra.mxu0 %v60
    %90 = vmatpush.msra.mxu0 %v59
    %91 = vmatmul.f32.gmra.mxu0 %v57
    %v92 = vpop.f32.mrf.mxu0
    %v93 = vadd.f32 0.0, %v92
    %94 = vmatmul.f32.gmra.mxu0 %v58
    %v95 = vpop.f32.mrf.mxu0
    %v96 = vadd.f32 0.0, %v95
    %97 = vdwg.mxu0
    %v98 = vmax.f32 %v93, 0.0
    %v99 = vmax.f32 %v96, 0.0
    %s100 = scalar_lea.vmem [#allocation2], 128
    %v101 = vld [vmem:[%s100] sm:$0xff]
    %v102 = vld [vmem:[%s100 + $0x8] sm:$0xff]
    %v103 = vld [vmem:[%s100 + $0x10] sm:$0xff]
    %v104 = vld [vmem:[%s100 + $0x18] sm:$0xff]
    %v105 = vld [vmem:[%s100 + $0x20] sm:$0xff]
    %v106 = vld [vmem:[%s100 + $0x28] sm:$0xff]
    %v107 = vld [vmem:[%s100 + $0x30] sm:$0xff]
    %v108 = vld [vmem:[%s100 + $0x38] sm:$0xff]
    %v109 = vld [vmem:[%s100 + $0x40] sm:$0xff]
    %v110 = vld [vmem:[%s100 + $0x48] sm:$0xff]
    %v111 = vld [vmem:[%s100 + $0x50] sm:$0xff]
    %v112 = vld [vmem:[%s100 + $0x58] sm:$0xff]
    %v113 = vld [vmem:[%s100 + $0x60] sm:$0xff]
    %v114 = vld [vmem:[%s100 + $0x68] sm:$0xff]
    %v115 = vld [vmem:[%s100 + $0x70] sm:$0xff]
    %v116 = vld [vmem:[%s100 + $0x78] sm:$0xff]
    %117 = vmatpush.msra.mxu0 %v116
    %118 = vmatpush.msra.mxu0 %v115
    %119 = vmatpush.msra.mxu0 %v114
    %120 = vmatpush.msra.mxu0 %v113
    %121 = vmatpush.msra.mxu0 %v112
    %122 = vmatpush.msra.mxu0 %v111
    %123 = vmatpush.msra.mxu0 %v110
    %124 = vmatpush.msra.mxu0 %v109
    %125 = vmatpush.msra.mxu0 %v108
    %126 = vmatpush.msra.mxu0 %v107
    %127 = vmatpush.msra.mxu0 %v106
    %128 = vmatpush.msra.mxu0 %v105
    %129 = vmatpush.msra.mxu0 %v104
    %130 = vmatpush.msra.mxu0 %v103
    %131 = vmatpush.msra.mxu0 %v102
    %132 = vmatpush.msra.mxu0 %v101
    %133 = vmatmul.f32.gmra.mxu0 %v98
    %v134 = vpop.f32.mrf.mxu0
    %v135 = vadd.f32 0.0, %v134
    %136 = vmatmul.f32.gmra.mxu0 %v99
    %v137 = vpop.f32.mrf.mxu0
    %v138 = vadd.f32 0.0, %v137
    %139 = vdwg.mxu0
    %vm140 = vcmp.lt.s32.totalorder %v31, 4
    %v141 = vsel %vm140, %v135, -1e+30
    %v142 = vsel %vm140, %v138, -1e+30
    %143 = vmax.xlane.f32.xlu0 %v141
    %v144 = vpop.xlane.xlu0 %143
    %145 = vmax.xlane.f32.xlu0 %v142
    %v146 = vpop.xlane.xlu0 %145
    %v147 = vsub.f32 %v141, %v144
    %v148 = vsub.f32 %v142, %v146
    %v149 = vmul.f32 %v147, 1.442695
    %v150 = vpow.pop %v149
    %v151 = vmul.f32 %v148, 1.442695
    %v152 = vpow.pop %v151
    %153 = vadd.xlane.f32.xlu0 %v150
    %v154 = vpop.xlane.xlu0 %153
    %155 = vadd.xlane.f32.xlu0 %v152
    %v156 = vpop.xlane.xlu0 %155
    %v157 = vrcp.pop %v154
    %v158 = vmul.f32 %v154, %v157
    %v159 = vsub.f32 1.0, %v158
    %v160 = vmul.f32 %v157, %v159
    %v161 = vadd.f32 %v157, %v160
    %vm162 = vweird.f32 %v154
    %vm163 = vweird.f32 %v157
    %vm164 = vmor %vm162, %vm163
    %v165 = vsel %vm164, %v157, %v161
    %v166 = vand.u32 2147483647, %v154
    %vm167 = vcmp.eq.f32.partialorder %v166, 8.507059e+37
    %v168 = vand.u32 %v154, 2147483648
    %v169 = vor.u32 1.1754944e-38, %v168
    %v170 = vsel %vm167, %v169, %v165
    %v171 = vrcp.pop %v156
    %v172 = vmul.f32 %v156, %v171
    %v173 = vsub.f32 1.0, %v172
    %v174 = vmul.f32 %v171, %v173
    %v175 = vadd.f32 %v171, %v174
    %vm176 = vweird.f32 %v156
    %vm177 = vweird.f32 %v171
    %vm178 = vmor %vm176, %vm177
    %v179 = vsel %vm178, %v171, %v175
    %v180 = vand.u32 2147483647, %v156
    %vm181 = vcmp.eq.f32.partialorder %v180, 8.507059e+37
    %v182 = vand.u32 %v156, 2147483648
    %v183 = vor.u32 1.1754944e-38, %v182
    %v184 = vsel %vm181, %v183, %v179
    %v185 = vmul.f32 %v150, %v170
    %v186 = vmul.f32 %v152, %v184
    %v187 = vsel %vm140, %v185, %v135
    %v188 = vsel %vm140, %v186, %v138
    %189 = vst [vmem:[#allocation5] sm:$0xff] %v187
    %190 = vst [vmem:[#allocation5 + $0x8] sm:$0xff] %v188
    // Predicated region
    $region14: #{actor_critic_forward.1} parent=1 // pred_check
      _
    $region15: #{actor_critic_forward.1} parent=1 // pred_check_branch
      %192 = sbr.rel (0) target = $region17
    $region16: #{actor_critic_forward.1} parent=1 // pred_region
      %194 = vsyncadd [#allocation4], 0
      %s195 = sshll.u32 [#allocation5], 4
      %s196 = int_to_ptr.vmem [resolvable:$true] %s195
      %s197 = sshll.u32 %s2, 4
      %s198 = int_to_ptr.hbm [resolvable:$true] %s197
      %203 = dma.vmem_to_hbm [thread:$0]  %s196, 256, %s198, [#allocation4], 128, 128, 8
    $region17: #{actor_critic_forward.1} parent=1 // pred_fallthru
      _
    // Predicated region
    $region18: #{actor_critic_forward.1} parent=1 // pred_check
      _
    $region19: #{actor_critic_forward.1} parent=1 // pred_check_branch
      %205 = sbr.rel (0) target = $region21
    $region20: #{actor_critic_forward.1} parent=1 // pred_region
      %207 = dma.done [#allocation4], 256
    $region21: #{actor_critic_forward.1} parent=1 // pred_fallthru
      _
    %208 = vsyncpa [#allocation3], 1
    %209 = vsyncpa [#allocation4], 1

</llo_original>
